<compile_context>
chip_gen: v7x
topology: tpu7x:2x2x1
jax: 0.10.0
libtpu: 0.0.40
codegen_flags: <defaults>
</compile_context>

<pallas_src>
import jax
import jax.numpy as jnp
from jax.experimental import pallas as pl
from jax.experimental.pallas import tpu as pltpu

INPUT_SIZE = 16
HIDDEN_SIZE = 32
MAP_SIZE = 9
BATCH = 2
SEQ_LEN = 8
LANES = 128

# Row offsets inside the packed weight slab (all 8-sublane aligned).
R_WE, R_WIHX, R_WIHH, R_WOUT = 0, 16, 48, 80
R_BE, R_BIH, R_BOUT = 112, 120, 128
W_ROWS = 136

# Lane layout of the packed per-timestep output row (B, 128).
L_MAP = 0              # lanes [0, 9)   : map (pre-sigmoid readout)
L_NUM = MAP_SIZE       # lane  9        : num = sum(sigmoid(map))
L_HID = 32             # lanes [32, 64) : new hidden state


def _num_as_mapsum_kernel(x_ref, h0_ref, w_ref, out_ref, h_scr):
    # grid = (S, T): S = independent sequences ("parallel"), T = time ("arbitrary").
    t = pl.program_id(1)

    @pl.when(t == 0)
    def _():
        h_scr[...] = h0_ref[0]

    x = x_ref[0, 0]                  # (B, INPUT_SIZE)
    h = h_scr[...]                   # (B, HIDDEN_SIZE)

    # Static slices of the resident weight slab.
    we = w_ref[R_WE:R_WE + INPUT_SIZE, 0:HIDDEN_SIZE]
    wih_x = w_ref[R_WIHX:R_WIHX + HIDDEN_SIZE, 0:HIDDEN_SIZE]
    wih_h = w_ref[R_WIHH:R_WIHH + HIDDEN_SIZE, 0:HIDDEN_SIZE]
    w_out = w_ref[R_WOUT:R_WOUT + HIDDEN_SIZE, 0:MAP_SIZE]
    be = w_ref[R_BE:R_BE + 1, 0:HIDDEN_SIZE]
    bih = w_ref[R_BIH:R_BIH + 1, 0:HIDDEN_SIZE]
    b_out = w_ref[R_BOUT:R_BOUT + 1, 0:MAP_SIZE]

    # Embedding + LeakyReLU(0.1).
    emb = jnp.dot(x, we, preferred_element_type=jnp.float32) + be
    emb = jnp.maximum(emb, 0.1 * emb)

    # Elman cell: tanh([emb, h] @ Wi2h + b) as a lane-dense split sum
    # (do NOT materialize the concat -- that would need cross-lane shifts).
    h_new = jnp.tanh(
        jnp.dot(emb, wih_x, preferred_element_type=jnp.float32)
        + jnp.dot(h, wih_h, preferred_element_type=jnp.float32)
        + bih)
    h_scr[...] = h_new

    # Folded (h2o @ readout) projection -> map; sigmoid via EUP exp + vrcp.
    m = jnp.dot(h_new, w_out, preferred_element_type=jnp.float32) + b_out
    sig = pl.reciprocal(1.0 + jnp.exp(-m), approx=True)
    num = jnp.sum(sig, axis=1, keepdims=True)          # (B, 1)

    # Single lane-dense (B, 128) store: [map | num | 0 | h_new | 0].
    b = m.shape[0]
    row = jnp.concatenate(
        [m,
         num,
         jnp.zeros((b, L_HID - MAP_SIZE - 1), jnp.float32),
         h_new,
         jnp.zeros((b, LANES - L_HID - HIDDEN_SIZE), jnp.float32)],
        axis=1)
    out_ref[0, 0] = row


def num_as_mapsum_scan(xs, hidden0, w_slab):
    """Run the whole sequence in one kernel.

    xs:      (S, T, B, INPUT_SIZE)
    hidden0: (S, B, HIDDEN_SIZE)
    w_slab:  (W_ROWS, 128) packed weights (see pack_params)
    Returns: num (S, T, B), map (S, T, B, MAP_SIZE), hidden (S, B, HIDDEN_SIZE)
    """
    S, T, B, _ = xs.shape
    out = pl.pallas_call(
        _num_as_mapsum_kernel,
        out_shape=jax.ShapeDtypeStruct((S, T, B, LANES), jnp.float32),
        grid_spec=pltpu.PrefetchScalarGridSpec(
            num_scalar_prefetch=0,
            grid=(S, T),
            in_specs=[
                pl.BlockSpec((1, 1, B, INPUT_SIZE), lambda s, t: (s, t, 0, 0)),
                pl.BlockSpec((1, B, HIDDEN_SIZE), lambda s, t: (s, 0, 0)),
                pl.BlockSpec((W_ROWS, LANES), lambda s, t: (0, 0)),
            ],
            out_specs=pl.BlockSpec((1, 1, B, LANES), lambda s, t: (s, t, 0, 0)),
            scratch_shapes=[pltpu.VMEM((B, HIDDEN_SIZE), jnp.float32)],
        ),
        compiler_params=pltpu.CompilerParams(
            dimension_semantics=("parallel", "arbitrary")),
    )(xs, hidden0, w_slab)

    num = out[..., L_NUM]                                   # (S, T, B)
    map_out = out[..., L_MAP:L_MAP + MAP_SIZE]              # (S, T, B, 9)
    hidden = out[:, -1, :, L_HID:L_HID + HIDDEN_SIZE]       # (S, B, H)
    return num, map_out, hidden


def num_as_mapsum_forward(x, hidden, w_slab):
    """Single-step interface identical to the PyTorch module forward."""
    num, m, h = num_as_mapsum_scan(x[None, None], hidden[None], w_slab)
    return num[0, 0], m[0, 0], h[0]


def init_params(key):
    """PyTorch-like uniform(-1/sqrt(fan_in), 1/sqrt(fan_in)) init.

    Weights are stored as (in_features, out_features) = transpose of nn.Linear.
    """
    ks = jax.random.split(key, 8)

    def lin(kw, kb, fan_in, fan_out):
        bound = 1.0 / jnp.sqrt(jnp.float32(fan_in))
        w = jax.random.uniform(kw, (fan_in, fan_out), jnp.float32, -bound, bound)
        b = jax.random.uniform(kb, (1, fan_out), jnp.float32, -bound, bound)
        return w, b

    we, be = lin(ks[0], ks[1], INPUT_SIZE, HIDDEN_SIZE)
    wih, bih = lin(ks[2], ks[3], 2 * HIDDEN_SIZE, HIDDEN_SIZE)   # i2h on concat
    who, bho = lin(ks[4], ks[5], HIDDEN_SIZE, HIDDEN_SIZE)
    wro, bro = lin(ks[6], ks[7], HIDDEN_SIZE, MAP_SIZE)

    return {
        "we": we, "be": be,
        "wih_x": wih[:HIDDEN_SIZE, :],
        "wih_h": wih[HIDDEN_SIZE:, :],
        "bih": bih,
        "who": who, "bho": bho,
        "wro": wro, "bro": bro,
    }


def pack_params(p):
    """Fold h2o+readout and pack all weights/biases into one (136,128) slab."""
    w_out = p["who"] @ p["wro"]               # (H, M) -- exact fold
    b_out = p["bho"] @ p["wro"] + p["bro"]    # (1, M)
    slab = jnp.zeros((W_ROWS, LANES), jnp.float32)
    slab = slab.at[R_WE:R_WE + INPUT_SIZE, 0:HIDDEN_SIZE].set(p["we"])
    slab = slab.at[R_WIHX:R_WIHX + HIDDEN_SIZE, 0:HIDDEN_SIZE].set(p["wih_x"])
    slab = slab.at[R_WIHH:R_WIHH + HIDDEN_SIZE, 0:HIDDEN_SIZE].set(p["wih_h"])
    slab = slab.at[R_WOUT:R_WOUT + HIDDEN_SIZE, 0:MAP_SIZE].set(w_out)
    slab = slab.at[R_BE, 0:HIDDEN_SIZE].set(p["be"][0])
    slab = slab.at[R_BIH, 0:HIDDEN_SIZE].set(p["bih"][0])
    slab = slab.at[R_BOUT, 0:MAP_SIZE].set(b_out[0])
    return slab


def reference_scan(xs_tb, h0, p):
    """Pure-JAX reference (un-fused h2o/readout) for numerical sanity."""
    def step(h, x):
        emb = x @ p["we"] + p["be"]
        emb = jnp.where(emb > 0, emb, 0.1 * emb)
        h_new = jnp.tanh(emb @ p["wih_x"] + h @ p["wih_h"] + p["bih"])
        r = h_new @ p["who"] + p["bho"]
        m = r @ p["wro"] + p["bro"]
        num = jax.nn.sigmoid(m).sum(axis=1)
        return h_new, (num, m)

    h_fin, (nums, maps) = jax.lax.scan(step, h0, xs_tb)
    return nums, maps, h_fin


if __name__ == "__main__":
    key = jax.random.PRNGKey(0)
    k_params, k_x = jax.random.split(key)

    params = init_params(k_params)
    w_slab = pack_params(params)

    xs = jax.random.normal(k_x, (1, SEQ_LEN, BATCH, INPUT_SIZE), jnp.float32)
    h0 = jnp.zeros((1, BATCH, HIDDEN_SIZE), jnp.float32)     # initHidden -> zeros

    num, map_out, hid = num_as_mapsum_scan(xs, h0, w_slab)
    jax.block_until_ready((num, map_out, hid))

    assert num.shape == (1, SEQ_LEN, BATCH)
    assert map_out.shape == (1, SEQ_LEN, BATCH, MAP_SIZE)
    assert hid.shape == (1, BATCH, HIDDEN_SIZE)

    # Single-step interface (matches the PyTorch module forward signature).
    n1, m1, h1 = num_as_mapsum_forward(xs[0, 0], h0[0], w_slab)
    jax.block_until_ready((n1, m1, h1))
    assert n1.shape == (BATCH,)
    assert m1.shape == (BATCH, MAP_SIZE)
    assert h1.shape == (BATCH, HIDDEN_SIZE)

    # Numerical sanity vs. pure-JAX reference (generous tolerance: approx
    # reciprocal sigmoid + folded readout + default matmul precision).
    r_num, r_map, r_hid = reference_scan(xs[0], h0[0], params)
    assert jnp.allclose(map_out[0], r_map, atol=5e-2, rtol=5e-2)
    assert jnp.allclose(hid[0], r_hid, atol=5e-2, rtol=5e-2)
    assert jnp.allclose(num[0], r_num, atol=5e-2, rtol=5e-2)

    print("KERNEL_OK")
</pallas_src>

<mosaic_0001>
module attributes {stable_mosaic.version = 11 : i64} {
  func.func @_num_as_mapsum_kernel(%arg0: i32, %arg1: i32, %arg2: memref<1x1x2x16xf32, #tpu.memory_space<vmem>>, %arg3: memref<1x2x32xf32, #tpu.memory_space<vmem>>, %arg4: memref<136x128xf32, #tpu.memory_space<vmem>>, %arg5: memref<1x1x2x128xf32, #tpu.memory_space<vmem>>, %arg6: memref<2x32xf32, #tpu.memory_space<vmem>>) attributes {dimension_semantics = [#tpu.dimension_semantics<parallel>, #tpu.dimension_semantics<arbitrary>], iteration_bounds = array<i64: 1, 8>, scalar_prefetch = 0 : i64, scratch_operands = 1 : i64, tpu.core_type = #tpu.core_type<tc>, window_params = [{transform_indices = @transform_0, window_bounds = array<i64: 1, 1, 2, 16>}, {transform_indices = @transform_1, window_bounds = array<i64: 1, 2, 32>}, {pipeline_mode = #tpu.pipeline_mode<synchronous>, transform_indices = @transform_2, window_bounds = array<i64: 136, 128>}, {transform_indices = @transform_3, window_bounds = array<i64: 1, 1, 2, 128>}]} {
    %c0_i32 = arith.constant 0 : i32
    %0 = arith.cmpi eq, %arg1, %c0_i32 : i32
    %1 = arith.extui %0 : i1 to i32
    %c0_i32_0 = arith.constant 0 : i32
    %2 = arith.cmpi ne, %1, %c0_i32_0 : i32
    scf.if %2 {
      %c0_29 = arith.constant 0 : index
      %c0_30 = arith.constant 0 : index
      %c0_31 = arith.constant 0 : index
      %43 = vector.load %arg3[%c0_29, %c0_30, %c0_31] : memref<1x2x32xf32, #tpu.memory_space<vmem>>, vector<1x2x32xf32>
      %44 = vector.shape_cast %43 : vector<1x2x32xf32> to vector<2x32xf32>
      %c0_32 = arith.constant 0 : index
      %c0_33 = arith.constant 0 : index
      %45 = vector.load %arg6[%c0_32, %c0_33] : memref<2x32xf32, #tpu.memory_space<vmem>>, vector<2x32xf32>
      tpu.vector_store %arg6[%c0_32, %c0_33], %44 {strides = array<i32>} : memref<2x32xf32, #tpu.memory_space<vmem>>, vector<2x32xf32>,
    } else {
    }
    %c0 = arith.constant 0 : index
    %c0_1 = arith.constant 0 : index
    %c0_2 = arith.constant 0 : index
    %c0_3 = arith.constant 0 : index
    %3 = vector.load %arg2[%c0, %c0_1, %c0_2, %c0_3] : memref<1x1x2x16xf32, #tpu.memory_space<vmem>>, vector<1x1x2x16xf32>
    %4 = vector.shape_cast %3 : vector<1x1x2x16xf32> to vector<2x16xf32>
    %c0_4 = arith.constant 0 : index
    %c0_5 = arith.constant 0 : index
    %5 = vector.load %arg6[%c0_4, %c0_5] : memref<2x32xf32, #tpu.memory_space<vmem>>, vector<2x32xf32>
    %c0_6 = arith.constant 0 : index
    %c0_7 = arith.constant 0 : index
    %6 = vector.load %arg4[%c0_6, %c0_7] : memref<136x128xf32, #tpu.memory_space<vmem>>, vector<16x32xf32>
    %c16 = arith.constant 16 : index
    %c0_8 = arith.constant 0 : index
    %7 = vector.load %arg4[%c16, %c0_8] : memref<136x128xf32, #tpu.memory_space<vmem>>, vector<32x32xf32>
    %c48 = arith.constant 48 : index
    %c0_9 = arith.constant 0 : index
    %8 = vector.load %arg4[%c48, %c0_9] : memref<136x128xf32, #tpu.memory_space<vmem>>, vector<32x32xf32>
    %c80 = arith.constant 80 : index
    %c0_10 = arith.constant 0 : index
    %9 = vector.load %arg4[%c80, %c0_10] : memref<136x128xf32, #tpu.memory_space<vmem>>, vector<32x9xf32>
    %c112 = arith.constant 112 : index
    %c0_11 = arith.constant 0 : index
    %10 = vector.load %arg4[%c112, %c0_11] : memref<136x128xf32, #tpu.memory_space<vmem>>, vector<1x32xf32>
    %c120 = arith.constant 120 : index
    %c0_12 = arith.constant 0 : index
    %11 = vector.load %arg4[%c120, %c0_12] : memref<136x128xf32, #tpu.memory_space<vmem>>, vector<1x32xf32>
    %c128 = arith.constant 128 : index
    %c0_13 = arith.constant 0 : index
    %12 = vector.load %arg4[%c128, %c0_13] : memref<136x128xf32, #tpu.memory_space<vmem>>, vector<1x9xf32>
    %cst = arith.constant dense<0.000000e+00> : vector<2x32xf32>
    %13 = tpu.matmul %4, %6, %cst {dimension_numbers = #tpu.dot_dimension_numbers<[1], [0], [0], [1], [0, 0, 1, 1], [], []>} : vector<2x16xf32>, vector<16x32xf32>, vector<2x32xf32> -> vector<2x32xf32>
    %14 = vector.broadcast %10 : vector<1x32xf32> to vector<2x32xf32>
    %15 = arith.addf %13, %14 : vector<2x32xf32>
    %cst_14 = arith.constant 1.000000e-01 : f32
    %16 = vector.broadcast %cst_14 : f32 to vector<2x32xf32>
    %17 = arith.mulf %16, %15 : vector<2x32xf32>
    %18 = arith.maximumf %15, %17 : vector<2x32xf32>
    %cst_15 = arith.constant dense<0.000000e+00> : vector<2x32xf32>
    %19 = tpu.matmul %18, %7, %cst_15 {dimension_numbers = #tpu.dot_dimension_numbers<[1], [0], [0], [1], [0, 0, 1, 1], [], []>} : vector<2x32xf32>, vector<32x32xf32>, vector<2x32xf32> -> vector<2x32xf32>
    %cst_16 = arith.constant dense<0.000000e+00> : vector<2x32xf32>
    %20 = tpu.matmul %5, %8, %cst_16 {dimension_numbers = #tpu.dot_dimension_numbers<[1], [0], [0], [1], [0, 0, 1, 1], [], []>} : vector<2x32xf32>, vector<32x32xf32>, vector<2x32xf32> -> vector<2x32xf32>
    %21 = arith.addf %19, %20 : vector<2x32xf32>
    %22 = vector.broadcast %11 : vector<1x32xf32> to vector<2x32xf32>
    %23 = arith.addf %21, %22 : vector<2x32xf32>
    %24 = math.tanh %23 : vector<2x32xf32>
    %c0_17 = arith.constant 0 : index
    %c0_18 = arith.constant 0 : index
    %25 = vector.load %arg6[%c0_17, %c0_18] : memref<2x32xf32, #tpu.memory_space<vmem>>, vector<2x32xf32>
    tpu.vector_store %arg6[%c0_17, %c0_18], %24 {strides = array<i32>} : memref<2x32xf32, #tpu.memory_space<vmem>>, vector<2x32xf32>,
    %cst_19 = arith.constant dense<0.000000e+00> : vector<2x9xf32>
    %26 = tpu.matmul %24, %9, %cst_19 {dimension_numbers = #tpu.dot_dimension_numbers<[1], [0], [0], [1], [0, 0, 1, 1], [], []>} : vector<2x32xf32>, vector<32x9xf32>, vector<2x9xf32> -> vector<2x9xf32>
    %27 = vector.broadcast %12 : vector<1x9xf32> to vector<2x9xf32>
    %28 = arith.addf %26, %27 : vector<2x9xf32>
    %cst_20 = arith.constant 0.000000e+00 : f32
    %29 = vector.broadcast %cst_20 : f32 to vector<2x9xf32>
    %30 = arith.subf %29, %28 : vector<2x9xf32>
    %31 = math.exp %30 : vector<2x9xf32>
    %cst_21 = arith.constant 1.000000e+00 : f32
    %32 = vector.broadcast %cst_21 : f32 to vector<2x9xf32>
    %33 = arith.addf %32, %31 : vector<2x9xf32>
    %34 = tpu.reciprocal %33 {approx = true} : vector<2x9xf32> -> vector<2x9xf32>
    %cst_22 = arith.constant dense<0.000000e+00> : vector<2xf32>
    %35 = vector.multi_reduction <add>, %34, %cst_22 [1] : vector<2x9xf32> to vector<2xf32>
    %36 = vector.shape_cast %35 : vector<2xf32> to vector<2x1xf32>
    %cst_23 = arith.constant 0.000000e+00 : f32
    %37 = vector.broadcast %cst_23 : f32 to vector<2x22xf32>
    %cst_24 = arith.constant 0.000000e+00 : f32
    %38 = vector.broadcast %cst_24 : f32 to vector<2x64xf32>
    %39 = tpu.concatenate %28, %36, %37, %24, %38 in 1 : vector<2x9xf32>, vector<2x1xf32>, vector<2x22xf32>, vector<2x32xf32>, vector<2x64xf32> -> vector<2x128xf32>
    %c0_25 = arith.constant 0 : index
    %c0_26 = arith.constant 0 : index
    %c0_27 = arith.constant 0 : index
    %c0_28 = arith.constant 0 : index
    %40 = vector.load %arg5[%c0_25, %c0_26, %c0_27, %c0_28] : memref<1x1x2x128xf32, #tpu.memory_space<vmem>>, vector<1x1x2x128xf32>
    %41 = vector.shape_cast %40 : vector<1x1x2x128xf32> to vector<2x128xf32>
    %42 = vector.shape_cast %39 : vector<2x128xf32> to vector<1x1x2x128xf32>
    tpu.vector_store %arg5[%c0_25, %c0_26, %c0_27, %c0_28], %42 {strides = array<i32>} : memref<1x1x2x128xf32, #tpu.memory_space<vmem>>, vector<1x1x2x128xf32>,
    return
  }
  func.func @transform_0(%arg0: i32, %arg1: i32) -> (i32, i32, i32, i32) {
    %c0_i32 = arith.constant 0 : i32
    %c0_i32_0 = arith.constant 0 : i32
    %c0_i32_1 = arith.constant 0 : i32
    return %arg0, %arg1, %c0_i32, %c0_i32_0 : i32, i32, i32, i32
  }
  func.func @transform_1(%arg0: i32, %arg1: i32) -> (i32, i32, i32) {
    %c0_i32 = arith.constant 0 : i32
    %c0_i32_0 = arith.constant 0 : i32
    %c0_i32_1 = arith.constant 0 : i32
    return %arg0, %c0_i32, %c0_i32_0 : i32, i32, i32
  }
  func.func @transform_2(%arg0: i32, %arg1: i32) -> (i32, i32) {
    %c0_i32 = arith.constant 0 : i32
    %c0_i32_0 = arith.constant 0 : i32
    %c0_i32_1 = arith.constant 0 : i32
    return %c0_i32, %c0_i32_0 : i32, i32
  }
  func.func @transform_3(%arg0: i32, %arg1: i32) -> (i32, i32, i32, i32) {
    %c0_i32 = arith.constant 0 : i32
    %c0_i32_0 = arith.constant 0 : i32
    %c0_i32_1 = arith.constant 0 : i32
    return %arg0, %arg1, %c0_i32, %c0_i32_0 : i32, i32, i32, i32
  }
}

</mosaic_0001>

<llo_original>
// kernel: tpu_custom_call.1
$region0: #{tpu_custom_call.1}
  #allocation0 [shape = 'u32[]', space=smem, size = 0x4, offset = 0x4, fixed_abs, tag = 'smem constant byte address 0x4 - core index']
  #allocation1 [shape = 'u32[144,128]{1,0:T(1,128)}', space=vmem, size = 0x12000, scoped, tag = 'internal scratch']
  #allocation2 [shape = 'f32[2,32]{1,0:T(2,128)}', space=vmem, size = 0x400, scoped, tag = 'scratch operand']
  %s0 = inlined_call_operand.hbm [shape: f32[1,8,2,16], index: 0, kind: input, shape index: {}]
  %s1 = inlined_call_operand.vmem [shape: f32[1,2,32], index: 1, kind: input, shape index: {}]
  %s2 = inlined_call_operand.hbm [shape: f32[136,128], index: 2, kind: input, shape index: {}]
  %s3 = inlined_call_operand.hbm [shape: f32[1,8,2,128], index: 3, kind: output, shape index: {}]
  %s4 = sld [smem:[#allocation0]]
  $region57: #{tpu_custom_call.1} parent=0
    _
  %s6 = ssub.s32 1, %s4
  %s7 = scalar_select 0, %s6, %s4
  $region1: #{tpu_custom_call.1} parent=0
    #allocation3 [shape = 'u8[2048]{0}', space=vmem, size = 0x800, scoped, tag = 'input window, operand 0']
    #allocation4 [shape = 's32[2]{0}', space=sflag, size = 0x8, scoped, tag = 'scoped memory for tpu_custom_call.1']
    #allocation5 [shape = 's32[2]{0}', space=sflag, size = 0x8, scoped, tag = 'scoped memory for tpu_custom_call.1']
    #allocation6 [shape = 'u8[69632]{0}', space=vmem, size = 0x11000, scoped, tag = 'input window, operand 2, single buffered']
    #allocation7 [shape = 's32[1]{0}', space=sflag, size = 0x4, scoped, tag = 'scoped memory for tpu_custom_call.1']
    #allocation8 [shape = 'u8[2048]{0}', space=vmem, size = 0x800, scoped, tag = 'output window, operand 0']
    %8 = vsyncpa [#allocation4], 0
    %s9 = scalar_lea.sflag [#allocation4], 1
    %10 = vsyncpa %s9, 0
    %11 = vsyncpa [#allocation7], 0
    %12 = vsyncpa [#allocation5], 0
    %s13 = scalar_lea.sflag [#allocation5], 1
    %14 = vsyncpa %s13, 0
    loop: start=0, step=1, limit=10
    $region2: #{tpu_custom_call.1} parent=1 // loop_pre_header
      _
    $region3: #{tpu_custom_call.1} parent=1 // loop_header
      %s16 = sphi 0, %s20
      %p17 = scmp.ge.s32.totalorder %s16, 10
      %s23 = sphi 0, %s35
      %s24 = sphi 0, %s31
      %s25 = sphi 0, %s23
      %s26 = sphi 0, %s24
      %s27 = sphi 0, %s25
      %s28 = sphi 0, %s26
      %s40 = sphi 0, %s42
      %s43 = sphi 0, %s40
      %s44 = sphi 0, %s43
      %s60 = sphi 0, %s44
      %s66 = sphi 0, %s68
      %s69 = sphi 0, %s66
      %s70 = sphi 0, %s69
      %s86 = sphi 0, %s70
      %s90 = sphi 0, %s90
      %s92 = sphi 0, %s90
      %s93 = sphi 0, %s92
      %s107 = sphi 0, %s93
      %s115 = sphi 0, %s117
      %s118 = sphi 0, %s115
      %s119 = sphi 0, %s118
      %s135 = sphi 0, %s119
    $region4: #{tpu_custom_call.1} parent=1 // loop_header_branch
      %19 = sbr.rel (%p17) target = $region8
    $region5: #{tpu_custom_call.1} parent=1 // loop_body
      %s21 = ssub.s32 %s16, 1
      %s22 = ssub.s32 %s16, 2
      %s29 = sadd.s32 1, %s24
      %p30 = scmp.ge.s32.totalorder %s29, 8
      %s31 = scalar_select %p30, 0, %s29
      %s32 = sadd.s32 1, %s23
      %s33 = scalar_select %p30, %s32, %s23
      %p34 = scmp.ge.s32.totalorder %s33, 1
      %s35 = scalar_select %p34, 0, %s33
      %s36 = ssub.s32 %s23, %s35
      %s37 = ssub.s32 %s24, %s31
      %s38 = sor.u32 %s36, %s37
      %p39 = scmp.eq.s32.totalorder %s38, 0
      %s41 = sadd.s32 %s40, 1
      %s42 = scalar_select %p39, %s40, %s41
      %p45 = pneg %p39
      %p46 = scmp.eq.s32.totalorder %s16, 7
      %p47 = por %p45, %p46
      %p48 = scmp.ne.s32.totalorder %s40, %s43
      %p49 = scmp.eq.s32.totalorder %s16, 0
      %p50 = por %p48, %p49
      %p51 = scmp.ne.s32.totalorder %s40, %s43
      %p52 = scmp.eq.s32.totalorder %s21, 7
      %p53 = por %p51, %p52
      %p54 = scmp.ne.s32.totalorder %s43, %s44
      %p55 = scmp.eq.s32.totalorder %s21, 0
      %p56 = por %p54, %p55
      %p57 = scmp.ne.s32.totalorder %s43, %s44
      %p58 = scmp.eq.s32.totalorder %s22, 7
      %p59 = por %p57, %p58
      %p61 = scmp.ne.s32.totalorder %s44, %s60
      %p62 = scmp.eq.s32.totalorder %s22, 0
      %p63 = por %p61, %p62
      %s64 = ssub.s32 %s23, %s35
      %p65 = scmp.eq.s32.totalorder %s64, 0
      %s67 = sadd.s32 %s66, 1
      %s68 = scalar_select %p65, %s66, %s67
      %p71 = pneg %p65
      %p72 = scmp.eq.s32.totalorder %s16, 7
      %p73 = por %p71, %p72
      %p74 = scmp.ne.s32.totalorder %s66, %s69
      %p75 = scmp.eq.s32.totalorder %s16, 0
      %p76 = por %p74, %p75
      %p77 = scmp.ne.s32.totalorder %s66, %s69
      %p78 = scmp.eq.s32.totalorder %s21, 7
      %p79 = por %p77, %p78
      %p80 = scmp.ne.s32.totalorder %s69, %s70
      %p81 = scmp.eq.s32.totalorder %s21, 0
      %p82 = por %p80, %p81
      %p83 = scmp.ne.s32.totalorder %s69, %s70
      %p84 = scmp.eq.s32.totalorder %s22, 7
      %p85 = por %p83, %p84
      %p87 = scmp.ne.s32.totalorder %s70, %s86
      %p88 = scmp.eq.s32.totalorder %s22, 0
      %p89 = por %p87, %p88
      %s91 = sadd.s32 %s90, 1
      %p94 = scmp.eq.s32.totalorder %s16, 7
      %p95 = scmp.ne.s32.totalorder %s90, %s92
      %p96 = scmp.eq.s32.totalorder %s16, 0
      %p97 = por %p95, %p96
      %p98 = scmp.ne.s32.totalorder %s90, %s92
      %p99 = scmp.eq.s32.totalorder %s21, 7
      %p100 = por %p98, %p99
      %p101 = scmp.ne.s32.totalorder %s92, %s93
      %p102 = scmp.eq.s32.totalorder %s21, 0
      %p103 = por %p101, %p102
      %p104 = scmp.ne.s32.totalorder %s92, %s93
      %p105 = scmp.eq.s32.totalorder %s22, 7
      %p106 = por %p104, %p105
      %p108 = scmp.ne.s32.totalorder %s93, %s107
      %p109 = scmp.eq.s32.totalorder %s22, 0
      %p110 = por %p108, %p109
      %s111 = ssub.s32 %s23, %s35
      %s112 = ssub.s32 %s24, %s31
      %s113 = sor.u32 %s111, %s112
      %p114 = scmp.eq.s32.totalorder %s113, 0
      %s116 = sadd.s32 %s115, 1
      %s117 = scalar_select %p114, %s115, %s116
      %p120 = pneg %p114
      %p121 = scmp.eq.s32.totalorder %s16, 7
      %p122 = por %p120, %p121
      %p123 = scmp.ne.s32.totalorder %s115, %s118
      %p124 = scmp.eq.s32.totalorder %s16, 0
      %p125 = por %p123, %p124
      %p126 = scmp.ne.s32.totalorder %s115, %s118
      %p127 = scmp.eq.s32.totalorder %s21, 7
      %p128 = por %p126, %p127
      %p129 = scmp.ne.s32.totalorder %s118, %s119
      %p130 = scmp.eq.s32.totalorder %s21, 0
      %p131 = por %p129, %p130
      %p132 = scmp.ne.s32.totalorder %s118, %s119
      %p133 = scmp.eq.s32.totalorder %s22, 7
      %p134 = por %p132, %p133
      %p136 = scmp.ne.s32.totalorder %s119, %s135
      %p137 = scmp.eq.s32.totalorder %s22, 0
      %p138 = por %p136, %p137
      %p139 = scmp.le.s32.totalorder 1, %s16
      %p140 = scmp.lt.s32.totalorder %s16, 9
      %p141 = pnand %p139, %p140
      %p142 = pneg %p141
      // Predicated region
      $region9: #{tpu_custom_call.1} parent=5 // pred_check
        _
      $region10: #{tpu_custom_call.1} parent=5 // pred_check_branch
        %144 = sbr.rel (%p141) target = $region12
      $region11: #{tpu_custom_call.1} parent=5 // pred_region
        %s145 = ssub.s32 %s16, 1
        // Predicated region
        $region13: #{tpu_custom_call.1} parent=11 // pred_check
          %p146 = pneg %p82
        $region14: #{tpu_custom_call.1} parent=11 // pred_check_branch
          %148 = sbr.rel (%p146) target = $region16
        $region15: #{tpu_custom_call.1} parent=11 // pred_region
          %p149 = scmp.lt.s32.totalorder %s25, 0
          %s150 = scalar_select %p149, %s25, 0
          %s151 = smul.addr %s150, 2
          %s152 = scalar_lea.vmem %s1, %s151
        $region16: #{tpu_custom_call.1} parent=11 // pred_fallthru
          _
        // Predicated region
        $region17: #{tpu_custom_call.1} parent=11 // pred_check
          %p153 = pneg %p103
        $region18: #{tpu_custom_call.1} parent=11 // pred_check_branch
          %155 = sbr.rel (%p153) target = $region20
        $region19: #{tpu_custom_call.1} parent=11 // pred_region
          %s157 = ssub.s32 2176, 2176
          %158 = vsyncadd [#allocation7], %s157
          %s159 = sshll.u32 [#allocation6], 4
          %s160 = int_to_ptr.vmem [resolvable:$true] %s159
          %165 = dma.hbm_to_vmem [thread:$0]  %s2, 2176, %s160, [#allocation7], 128, 128, 8
        $region20: #{tpu_custom_call.1} parent=11 // pred_fallthru
          _
      $region12: #{tpu_custom_call.1} parent=5 // pred_fallthru
        _
      %p166 = scmp.lt.s32.totalorder %s16, 8
      // Predicated region
      $region21: #{tpu_custom_call.1} parent=5 // pred_check
        %p167 = pneg %p166
      $region22: #{tpu_custom_call.1} parent=5 // pred_check_branch
        %169 = sbr.rel (%p167) target = $region24
      $region23: #{tpu_custom_call.1} parent=5 // pred_region
        // Predicated region
        $region25: #{tpu_custom_call.1} parent=23 // pred_check
          %p170 = pneg %p50
        $region26: #{tpu_custom_call.1} parent=23 // pred_check_branch
          %172 = sbr.rel (%p170) target = $region28
        $region27: #{tpu_custom_call.1} parent=23 // pred_region
          %s173 = sand.u32 %s40, 1
          %s174 = scalar_lea.sflag [#allocation4], %s173
          %s175 = sand.u32 %s40, 1
          %s176 = smul.addr %s175, 2
          %s177 = scalar_lea.vmem [#allocation3], %s176
          %s179 = ssub.s32 32, 32
          %180 = vsyncadd %s174, %s179
          %s181 = smul.addr %s23, 8
          %s182 = sadd.s32 %s24, %s181
          %s183 = smul.addr %s182, 32
          %s184 = scalar_lea.hbm %s0, %s183
          %s186 = sshll.u32 %s177, 4
          %s187 = int_to_ptr.vmem [resolvable:$true] %s186
          %189 = dma.hbm_to_vmem [thread:$0]  %s184, 32, %s187, %s174
        $region28: #{tpu_custom_call.1} parent=23 // pred_fallthru
          _
      $region24: #{tpu_custom_call.1} parent=5 // pred_fallthru
        _
      %p190 = scmp.le.s32.totalorder 1, %s16
      %p191 = scmp.lt.s32.totalorder %s16, 9
      %p192 = pnand %p190, %p191
      %p193 = pneg %p192
      // Predicated region
      $region29: #{tpu_custom_call.1} parent=5 // pred_check
        _
      $region30: #{tpu_custom_call.1} parent=5 // pred_check_branch
        %195 = sbr.rel (%p192) target = $region32
      $region31: #{tpu_custom_call.1} parent=5 // pred_region
        %s196 = ssub.s32 %s16, 1
        %s197 = sand.u32 %s43, 1
        %s198 = scalar_lea.sflag [#allocation4], %s197
        %s199 = sand.u32 %s43, 1
        %s200 = smul.addr %s199, 2
        %s201 = scalar_lea.vmem [#allocation3], %s200
        // Predicated region
        $region33: #{tpu_custom_call.1} parent=31 // pred_check
          %p202 = pneg %p56
        $region34: #{tpu_custom_call.1} parent=31 // pred_check_branch
          %204 = sbr.rel (%p202) target = $region36
        $region35: #{tpu_custom_call.1} parent=31 // pred_region
          %205 = dma.done %s198, 32
        $region36: #{tpu_custom_call.1} parent=31 // pred_fallthru
          _
        // Predicated region
        $region37: #{tpu_custom_call.1} parent=31 // pred_check
          %p206 = pneg %p103
        $region38: #{tpu_custom_call.1} parent=31 // pred_check_branch
          %208 = sbr.rel (%p206) target = $region40
        $region39: #{tpu_custom_call.1} parent=31 // pred_region
          %209 = dma.done [#allocation7], 2176
        $region40: #{tpu_custom_call.1} parent=31 // pred_fallthru
          _
        %s210 = sand.u32 %s43, 1
        %s211 = scalar_lea.sflag [#allocation4], %s210
        %s212 = sand.u32 %s43, 1
        %s213 = smul.addr %s212, 2
        %s214 = scalar_lea.vmem [#allocation3], %s213
        %p215 = pneg %p56
        %p216 = pneg %p53
        %p217 = scmp.lt.s32.totalorder %s25, 0
        %s218 = scalar_select %p217, %s25, 0
        %s219 = smul.addr %s218, 2
        %s220 = scalar_lea.vmem %s1, %s219
        %p221 = pneg %p82
        %p222 = pneg %p79
        %p223 = pneg %p103
        %p224 = pneg %p100
        %p225 = pneg %p131
        %p226 = pneg %p128
        %s227 = sand.u32 %s118, 1
        %s228 = scalar_lea.sflag [#allocation5], %s227
        %s229 = sand.u32 %s118, 1
        %s230 = smul.addr %s229, 2
        %s231 = scalar_lea.vmem [#allocation8], %s230
        %p232 = scmp.lt.s32.totalorder %s25, 0
        %s233 = scalar_select %p232, %s25, 0
        %s234 = smul.addr %s233, 2
        %s235 = scalar_lea.vmem %s1, %s234
        %p236 = scmp.eq.s32.totalorder %s26, 0
        // Predicated region
        $region41: #{tpu_custom_call.1} parent=31 // pred_check
          %p237 = pneg %p236
        $region42: #{tpu_custom_call.1} parent=31 // pred_check_branch
          %239 = sbr.rel (%p237) target = $region44
        $region43: #{tpu_custom_call.1} parent=31 // pred_region
          %v240 = vld [vmem:[%s235] sm:$0x3]
          %vm241 = vcmask 254976
          %242 = vst.msk [vmem:[#allocation2] sm:$0x3] %vm241, %v240
        $region44: #{tpu_custom_call.1} parent=31 // pred_fallthru
          _
        %v243 = vld [vmem:[%s201] sm:$0x3]
        %v244 = vld [vmem:[#allocation2] sm:$0x3]
        %v245 = vld [vmem:[#allocation6] sm:$0xff]
        %v246 = vld [vmem:[#allocation6 + $0x8] sm:$0xff]
        %v247 = vld [vmem:[#allocation6 + $0x10] sm:$0xff]
        %v248 = vld [vmem:[#allocation6 + $0x18] sm:$0xff]
        %v249 = vld [vmem:[#allocation6 + $0x20] sm:$0xff]
        %v250 = vld [vmem:[#allocation6 + $0x28] sm:$0xff]
        %v251 = vld [vmem:[#allocation6 + $0x30] sm:$0xff]
        %v252 = vld [vmem:[#allocation6 + $0x38] sm:$0xff]
        %v253 = vld [vmem:[#allocation6 + $0x40] sm:$0xff]
        %v254 = vld [vmem:[#allocation6 + $0x48] sm:$0xff]
        %v255 = vld [vmem:[#allocation6 + $0x50] sm:$0xff]
        %v256 = vld [vmem:[#allocation6 + $0x58] sm:$0xff]
        %v257 = vld [vmem:[#allocation6 + $0x60] sm:$0xff]
        %v258 = vld [vmem:[#allocation6 + $0x68] sm:$0xff]
        %v259 = vld [vmem:[#allocation6 + $0x70] sm:$0x1]
        %v260 = vld [vmem:[#allocation6 + $0x78] sm:$0x1]
        %v261 = vld [vmem:[#allocation6 + $0x80] sm:$0x1]
        %v262 = vlaneseq
        %v263 = vshrl.u32 %v262, 7
        %v264 = vsub.s32 0, %v263
        %v265 = vrot.slane %v259, %v264
        %vm266 = vcmask 130048
        %v268 = vsel %vm266, %v243, 0
        %270 = vmatprep.subr.mxu0 0.0
        %271 = vmatpush1.msra.mxu0 %v245
        %272 = vmatprep.subr.mxu0 0.0
        %273 = vmatpush1.msra.mxu0 %v246
        %274 = vmatprep.subr.mxu0 0.0
        %275 = vmatpush1.msra.mxu0 0.0
        %276 = vmatprep.subr.mxu0 0.0
        %277 = vmatpush1.msra.mxu0 0.0
        %278 = vmatprep.subr.mxu0 0.0
        %279 = vmatpush1.msra.mxu0 0.0
        %280 = vmatprep.subr.mxu0 0.0
        %281 = vmatpush1.msra.mxu0 0.0
        %282 = vmatprep.subr.mxu0 0.0
        %283 = vmatpush1.msra.mxu0 0.0
        %284 = vmatprep.subr.mxu0 0.0
        %285 = vmatpush1.msra.mxu0 0.0
        %286 = vmatprep.subr.mxu0 0.0
        %287 = vmatpush1.msra.mxu0 0.0
        %288 = vmatprep.subr.mxu0 0.0
        %289 = vmatpush1.msra.mxu0 0.0
        %290 = vmatprep.subr.mxu0 0.0
        %291 = vmatpush1.msra.mxu0 0.0
        %292 = vmatprep.subr.mxu0 0.0
        %293 = vmatpush1.msra.mxu0 0.0
        %294 = vmatprep.subr.mxu0 0.0
        %295 = vmatpush1.msra.mxu0 0.0
        %296 = vmatprep.subr.mxu0 0.0
        %297 = vmatpush1.msra.mxu0 0.0
        %298 = vmatprep.subr.mxu0 0.0
        %299 = vmatpush1.msra.mxu0 0.0
        %300 = vmatprep.subr.mxu0 0.0
        %301 = vmatpush1.msra.mxu0 0.0
        %302 = vmatprep.subr.mxu0 0.0
        %303 = vmatpush1.msra.mxu0 0.0
        %304 = vmatprep.subr.mxu0 0.0
        %305 = vmatpush1.msra.mxu0 0.0
        %306 = vmatprep.subr.mxu0 0.0
        %307 = vmatpush1.msra.mxu0 0.0
        %308 = vmatprep.subr.mxu0 0.0
        %309 = vmatpush1.msra.mxu0 0.0
        %310 = vmatprep.subr.mxu0 0.0
        %311 = vmatpush1.msra.mxu0 0.0
        %312 = vmatprep.subr.mxu0 0.0
        %313 = vmatpush1.msra.mxu0 0.0
        %314 = vmatprep.subr.mxu0 0.0
        %315 = vmatpush1.msra.mxu0 0.0
        %316 = vmatprep.subr.mxu0 0.0
        %317 = vmatpush1.msra.mxu0 0.0
        %318 = vmatprep.subr.mxu0 0.0
        %319 = vmatpush1.msra.mxu0 0.0
        %320 = vmatprep.subr.mxu0 0.0
        %321 = vmatpush1.msra.mxu0 0.0
        %322 = vmatprep.subr.mxu0 0.0
        %323 = vmatpush1.msra.mxu0 0.0
        %324 = vmatprep.subr.mxu0 0.0
        %325 = vmatpush1.msra.mxu0 0.0
        %326 = vmatprep.subr.mxu0 0.0
        %327 = vmatpush1.msra.mxu0 0.0
        %328 = vmatprep.subr.mxu0 0.0
        %329 = vmatpush1.msra.mxu0 0.0
        %330 = vmatprep.subr.mxu0 0.0
        %331 = vmatpush1.msra.mxu0 0.0
        %332 = vmatprep.subr.mxu0 0.0
        %333 = vmatpush1.msra.mxu0 0.0
        %334 = vmatprep.mubr.f32.mxu0 0.0
        %335 = vmatmul.mubr.f32.gmra.mrb[0].mxu0 %v268
        %v336 = vpop.f32.mrb[0].mxu0
        %v337 = vadd.f32 %v265, %v336
        %v338 = vpop.f32.mrb[0].mxu0
        %339 = vdwg.mxu0
        %v340 = vmul.f32 %v337, 0.1
        %v341 = vmax.f32 %v337, %v340
        %vm342 = vcmask 261120
        %v344 = vsel %vm342, %v244, 0
        %346 = vmatprep.subr.mxu0 0.0
        %347 = vmatpush1.msra.mxu0 %v251
        %348 = vmatprep.subr.mxu0 0.0
        %349 = vmatpush1.msra.mxu0 %v252
        %350 = vmatprep.subr.mxu0 0.0
        %351 = vmatpush1.msra.mxu0 %v253
        %352 = vmatprep.subr.mxu0 0.0
        %353 = vmatpush1.msra.mxu0 %v254
        %354 = vmatprep.subr.mxu0 0.0
        %355 = vmatpush1.msra.mxu0 0.0
        %356 = vmatprep.subr.mxu0 0.0
        %357 = vmatpush1.msra.mxu0 0.0
        %358 = vmatprep.subr.mxu0 0.0
        %359 = vmatpush1.msra.mxu0 0.0
        %360 = vmatprep.subr.mxu0 0.0
        %361 = vmatpush1.msra.mxu0 0.0
        %362 = vmatprep.subr.mxu0 0.0
        %363 = vmatpush1.msra.mxu0 0.0
        %364 = vmatprep.subr.mxu0 0.0
        %365 = vmatpush1.msra.mxu0 0.0
        %366 = vmatprep.subr.mxu0 0.0
        %367 = vmatpush1.msra.mxu0 0.0
        %368 = vmatprep.subr.mxu0 0.0
        %369 = vmatpush1.msra.mxu0 0.0
        %370 = vmatprep.subr.mxu0 0.0
        %371 = vmatpush1.msra.mxu0 0.0
        %372 = vmatprep.subr.mxu0 0.0
        %373 = vmatpush1.msra.mxu0 0.0
        %374 = vmatprep.subr.mxu0 0.0
        %375 = vmatpush1.msra.mxu0 0.0
        %376 = vmatprep.subr.mxu0 0.0
        %377 = vmatpush1.msra.mxu0 0.0
        %378 = vmatprep.subr.mxu0 0.0
        %379 = vmatpush1.msra.mxu0 0.0
        %380 = vmatprep.subr.mxu0 0.0
        %381 = vmatpush1.msra.mxu0 0.0
        %382 = vmatprep.subr.mxu0 0.0
        %383 = vmatpush1.msra.mxu0 0.0
        %384 = vmatprep.subr.mxu0 0.0
        %385 = vmatpush1.msra.mxu0 0.0
        %386 = vmatprep.subr.mxu0 0.0
        %387 = vmatpush1.msra.mxu0 0.0
        %388 = vmatprep.subr.mxu0 0.0
        %389 = vmatpush1.msra.mxu0 0.0
        %390 = vmatprep.subr.mxu0 0.0
        %391 = vmatpush1.msra.mxu0 0.0
        %392 = vmatprep.subr.mxu0 0.0
        %393 = vmatpush1.msra.mxu0 0.0
        %394 = vmatprep.subr.mxu0 0.0
        %395 = vmatpush1.msra.mxu0 0.0
        %396 = vmatprep.subr.mxu0 0.0
        %397 = vmatpush1.msra.mxu0 0.0
        %398 = vmatprep.subr.mxu0 0.0
        %399 = vmatpush1.msra.mxu0 0.0
        %400 = vmatprep.subr.mxu0 0.0
        %401 = vmatpush1.msra.mxu0 0.0
        %402 = vmatprep.subr.mxu0 0.0
        %403 = vmatpush1.msra.mxu0 0.0
        %404 = vmatprep.subr.mxu0 0.0
        %405 = vmatpush1.msra.mxu0 0.0
        %406 = vmatprep.subr.mxu0 0.0
        %407 = vmatpush1.msra.mxu0 0.0
        %408 = vmatprep.subr.mxu0 0.0
        %409 = vmatpush1.msra.mxu0 0.0
        %410 = vmatprep.mubr.f32.mxu0 0.0
        %411 = vmatmul.mubr.f32.gmra.mrb[0].mxu0 %v344
        %v412 = vpop.f32.mrb[0].mxu0
        %v413 = vadd.f32 0.0, %v412
        %v414 = vpop.f32.mrb[0].mxu0
        %415 = vdwg.mxu0
        %v417 = vsel %vm342, %v341, 0
        %419 = vmatprep.subr.mxu0 0.0
        %420 = vmatpush1.msra.mxu0 %v247
        %421 = vmatprep.subr.mxu0 0.0
        %422 = vmatpush1.msra.mxu0 %v248
        %423 = vmatprep.subr.mxu0 0.0
        %424 = vmatpush1.msra.mxu0 %v249
        %425 = vmatprep.subr.mxu0 0.0
        %426 = vmatpush1.msra.mxu0 %v250
        %427 = vmatprep.subr.mxu0 0.0
        %428 = vmatpush1.msra.mxu0 0.0
        %429 = vmatprep.subr.mxu0 0.0
        %430 = vmatpush1.msra.mxu0 0.0
        %431 = vmatprep.subr.mxu0 0.0
        %432 = vmatpush1.msra.mxu0 0.0
        %433 = vmatprep.subr.mxu0 0.0
        %434 = vmatpush1.msra.mxu0 0.0
        %435 = vmatprep.subr.mxu0 0.0
        %436 = vmatpush1.msra.mxu0 0.0
        %437 = vmatprep.subr.mxu0 0.0
        %438 = vmatpush1.msra.mxu0 0.0
        %439 = vmatprep.subr.mxu0 0.0
        %440 = vmatpush1.msra.mxu0 0.0
        %441 = vmatprep.subr.mxu0 0.0
        %442 = vmatpush1.msra.mxu0 0.0
        %443 = vmatprep.subr.mxu0 0.0
        %444 = vmatpush1.msra.mxu0 0.0
        %445 = vmatprep.subr.mxu0 0.0
        %446 = vmatpush1.msra.mxu0 0.0
        %447 = vmatprep.subr.mxu0 0.0
        %448 = vmatpush1.msra.mxu0 0.0
        %449 = vmatprep.subr.mxu0 0.0
        %450 = vmatpush1.msra.mxu0 0.0
        %451 = vmatprep.subr.mxu0 0.0
        %452 = vmatpush1.msra.mxu0 0.0
        %453 = vmatprep.subr.mxu0 0.0
        %454 = vmatpush1.msra.mxu0 0.0
        %455 = vmatprep.subr.mxu0 0.0
        %456 = vmatpush1.msra.mxu0 0.0
        %457 = vmatprep.subr.mxu0 0.0
        %458 = vmatpush1.msra.mxu0 0.0
        %459 = vmatprep.subr.mxu0 0.0
        %460 = vmatpush1.msra.mxu0 0.0
        %461 = vmatprep.subr.mxu0 0.0
        %462 = vmatpush1.msra.mxu0 0.0
        %463 = vmatprep.subr.mxu0 0.0
        %464 = vmatpush1.msra.mxu0 0.0
        %465 = vmatprep.subr.mxu0 0.0
        %466 = vmatpush1.msra.mxu0 0.0
        %467 = vmatprep.subr.mxu0 0.0
        %468 = vmatpush1.msra.mxu0 0.0
        %469 = vmatprep.subr.mxu0 0.0
        %470 = vmatpush1.msra.mxu0 0.0
        %471 = vmatprep.subr.mxu0 0.0
        %472 = vmatpush1.msra.mxu0 0.0
        %473 = vmatprep.subr.mxu0 0.0
        %474 = vmatpush1.msra.mxu0 0.0
        %475 = vmatprep.subr.mxu0 0.0
        %476 = vmatpush1.msra.mxu0 0.0
        %477 = vmatprep.subr.mxu0 0.0
        %478 = vmatpush1.msra.mxu0 0.0
        %479 = vmatprep.subr.mxu0 0.0
        %480 = vmatpush1.msra.mxu0 0.0
        %481 = vmatprep.subr.mxu0 0.0
        %482 = vmatpush1.msra.mxu0 0.0
        %483 = vmatprep.mubr.f32.mxu0 0.0
        %484 = vmatmul.mubr.f32.gmra.mrb[0].mxu0 %v417
        %v485 = vpop.f32.mrb[0].mxu0
        %v486 = vadd.f32 %v413, %v485
        %v487 = vpop.f32.mrb[0].mxu0
        %488 = vdwg.mxu0
        %v489 = vlaneseq
        %v490 = vshrl.u32 %v489, 7
        %v491 = vsub.s32 0, %v490
        %v492 = vrot.slane %v260, %v491
        %v493 = vadd.f32 %v486, %v492
        %v494 = vtanh.pop %v493
        %vm495 = vcmask 254976
        %496 = vst.msk [vmem:[#allocation2] sm:$0x3] %vm495, %v494
        %v497 = vlaneseq
        %v498 = vshrl.u32 %v497, 7
        %v499 = vsub.s32 0, %v498
        %v500 = vrot.slane %v261, %v499
        %v502 = vsel %vm342, %v494, 0
        %504 = vmatprep.subr.mxu0 0.0
        %505 = vmatpush1.msra.mxu0 %v255
        %506 = vmatprep.subr.mxu0 0.0
        %507 = vmatpush1.msra.mxu0 %v256
        %508 = vmatprep.subr.mxu0 0.0
        %509 = vmatpush1.msra.mxu0 %v257
        %510 = vmatprep.subr.mxu0 0.0
        %511 = vmatpush1.msra.mxu0 %v258
        %512 = vmatprep.subr.mxu0 0.0
        %513 = vmatpush1.msra.mxu0 0.0
        %514 = vmatprep.subr.mxu0 0.0
        %515 = vmatpush1.msra.mxu0 0.0
        %516 = vmatprep.subr.mxu0 0.0
        %517 = vmatpush1.msra.mxu0 0.0
        %518 = vmatprep.subr.mxu0 0.0
        %519 = vmatpush1.msra.mxu0 0.0
        %520 = vmatprep.subr.mxu0 0.0
        %521 = vmatpush1.msra.mxu0 0.0
        %522 = vmatprep.subr.mxu0 0.0
        %523 = vmatpush1.msra.mxu0 0.0
        %524 = vmatprep.subr.mxu0 0.0
        %525 = vmatpush1.msra.mxu0 0.0
        %526 = vmatprep.subr.mxu0 0.0
        %527 = vmatpush1.msra.mxu0 0.0
        %528 = vmatprep.subr.mxu0 0.0
        %529 = vmatpush1.msra.mxu0 0.0
        %530 = vmatprep.subr.mxu0 0.0
        %531 = vmatpush1.msra.mxu0 0.0
        %532 = vmatprep.subr.mxu0 0.0
        %533 = vmatpush1.msra.mxu0 0.0
        %534 = vmatprep.subr.mxu0 0.0
        %535 = vmatpush1.msra.mxu0 0.0
        %536 = vmatprep.subr.mxu0 0.0
        %537 = vmatpush1.msra.mxu0 0.0
        %538 = vmatprep.subr.mxu0 0.0
        %539 = vmatpush1.msra.mxu0 0.0
        %540 = vmatprep.subr.mxu0 0.0
        %541 = vmatpush1.msra.mxu0 0.0
        %542 = vmatprep.subr.mxu0 0.0
        %543 = vmatpush1.msra.mxu0 0.0
        %544 = vmatprep.subr.mxu0 0.0
        %545 = vmatpush1.msra.mxu0 0.0
        %546 = vmatprep.subr.mxu0 0.0
        %547 = vmatpush1.msra.mxu0 0.0
        %548 = vmatprep.subr.mxu0 0.0
        %549 = vmatpush1.msra.mxu0 0.0
        %550 = vmatprep.subr.mxu0 0.0
        %551 = vmatpush1.msra.mxu0 0.0
        %552 = vmatprep.subr.mxu0 0.0
        %553 = vmatpush1.msra.mxu0 0.0
        %554 = vmatprep.subr.mxu0 0.0
        %555 = vmatpush1.msra.mxu0 0.0
        %556 = vmatprep.subr.mxu0 0.0
        %557 = vmatpush1.msra.mxu0 0.0
        %558 = vmatprep.subr.mxu0 0.0
        %559 = vmatpush1.msra.mxu0 0.0
        %560 = vmatprep.subr.mxu0 0.0
        %561 = vmatpush1.msra.mxu0 0.0
        %562 = vmatprep.subr.mxu0 0.0
        %563 = vmatpush1.msra.mxu0 0.0
        %564 = vmatprep.subr.mxu0 0.0
        %565 = vmatpush1.msra.mxu0 0.0
        %566 = vmatprep.subr.mxu0 0.0
        %567 = vmatpush1.msra.mxu0 0.0
        %568 = vmatprep.mubr.f32.mxu0 0.0
        %569 = vmatmul.mubr.f32.gmra.mrb[0].mxu0 %v502
        %v570 = vpop.f32.mrb[0].mxu0
        %v571 = vadd.f32 %v500, %v570
        %v572 = vpop.f32.mrb[0].mxu0
        %573 = vdwg.mxu0
        %v574 = vsub.f32 0.0, %v571
        %v575 = vmul.f32 %v574, 1.442695
        %v576 = vpow.pop %v575
        %v577 = vadd.f32 %v576, 1.0
        %v578 = vrcp.pop %v577
        %vm579 = vcmask 66560
        %v580 = vsel %vm579, %v578, 0.0
        %581 = vadd.xlane.f32.xlu0 %v580
        %v582 = vpop.xlane.xlu0 %581
        %583 = vrot.lane.b32.xlu0 %v494, 32
        %v584 = vpop.permute.xlu0 %583
        %vm586 = vcmask 72704
        %v587 = vsel %vm586, %v571, %v582
        %vm588 = vcmask 80896
        %v589 = vsel %vm588, %v587, 0.0
        %v590 = vsel %vm342, %v589, %v584
        %vm591 = vcmask 523264
        %v592 = vsel %vm591, %v590, 0.0
        %593 = vst [vmem:[%s231] sm:$0x3] %v592
        %s594 = sand.u32 %s118, 1
        %s595 = scalar_lea.sflag [#allocation5], %s594
        %s596 = sand.u32 %s118, 1
        %s597 = smul.addr %s596, 2
        %s598 = scalar_lea.vmem [#allocation8], %s597
        // Predicated region
        $region45: #{tpu_custom_call.1} parent=31 // pred_check
          %p599 = pneg %p128
        $region46: #{tpu_custom_call.1} parent=31 // pred_check_branch
          %601 = sbr.rel (%p599) target = $region48
        $region47: #{tpu_custom_call.1} parent=31 // pred_region
          %s603 = ssub.s32 32, 32
          %604 = vsyncadd %s595, %s603
          %s605 = smul.addr %s25, 8
          %s606 = sadd.s32 %s26, %s605
          %s607 = smul.addr %s606, 32
          %s608 = scalar_lea.hbm %s3, %s607
          %s610 = sshll.u32 %s598, 4
          %s611 = int_to_ptr.vmem [resolvable:$true] %s610
          %613 = dma.vmem_to_hbm [thread:$0]  %s611, 32, %s608, %s595
        $region48: #{tpu_custom_call.1} parent=31 // pred_fallthru
          _
      $region32: #{tpu_custom_call.1} parent=5 // pred_fallthru
        _
      %p614 = scmp.le.s32.totalorder 2, %s16
      // Predicated region
      $region49: #{tpu_custom_call.1} parent=5 // pred_check
        %p615 = pneg %p614
      $region50: #{tpu_custom_call.1} parent=5 // pred_check_branch
        %617 = sbr.rel (%p615) target = $region52
      $region51: #{tpu_custom_call.1} parent=5 // pred_region
        %s618 = ssub.s32 %s16, 2
        // Predicated region
        $region53: #{tpu_custom_call.1} parent=51 // pred_check
          %p619 = pneg %p134
        $region54: #{tpu_custom_call.1} parent=51 // pred_check_branch
          %621 = sbr.rel (%p619) target = $region56
        $region55: #{tpu_custom_call.1} parent=51 // pred_region
          %s622 = sand.u32 %s119, 1
          %s623 = scalar_lea.sflag [#allocation5], %s622
          %s624 = sand.u32 %s119, 1
          %s625 = smul.addr %s624, 2
          %s626 = scalar_lea.vmem [#allocation8], %s625
          %627 = dma.done %s623, 32
        $region56: #{tpu_custom_call.1} parent=51 // pred_fallthru
          _
      $region52: #{tpu_custom_call.1} parent=5 // pred_fallthru
        _
    $region6: #{tpu_custom_call.1} parent=1 // loop_footer
      %s20 = sadd.s32 1, %s16
    $region7: #{tpu_custom_call.1} parent=1 // loop_footer_branch
      %15 = sbr.rel target = $region3
    $region8: #{tpu_custom_call.1} parent=1 // loop_exit
      _
    %628 = vsyncpa [#allocation4], 1
    %s629 = scalar_lea.sflag [#allocation4], 1
    %630 = vsyncpa %s629, 1
    %631 = vsyncpa [#allocation7], 1
    %632 = vsyncpa [#allocation5], 1
    %s633 = scalar_lea.sflag [#allocation5], 1
    %634 = vsyncpa %s633, 1

</llo_original>
